<compile_context>
chip_gen: v7x
topology: tpu7x:2x2x1
jax: 0.10.0
libtpu: 0.0.40
codegen_flags: <defaults>
</compile_context>

<pallas_src>
import functools

import jax
import jax.numpy as jnp
import numpy as np
from jax.experimental import pallas as pl
from jax.experimental.pallas import tpu as pltpu

_LANES = 128


def _round_up(x, m):
    return -(-x // m) * m


def _cdiv(a, b):
    return -(-a // b)


def _next_pow2(n):
    return 1 if n <= 1 else 1 << (n - 1).bit_length()


def _plan_grid(batch, group, *, target_in_bytes=1 << 20, pipeline_vmem_bytes=8 << 20):
    """Pick (padded_batch, block_rows, n_steps) for the 1-D batch grid."""
    # Alignment keeps every (rows, 128) block at >= (16, 128): valid for f32 and bf16 blocks.
    align = max(1024, 2048 // group)
    bp0 = _round_up(batch, align)
    bytes_per_row = group * 4                                   # f32, interleaved
    rows_target = max(align, target_in_bytes // bytes_per_row)  # ~1 MiB of input per step
    rows_cap = max(align, pipeline_vmem_bytes // (bytes_per_row * 4))  # in+out, double-buffered
    block_rows = _round_up(min(rows_target, rows_cap, bp0), align)
    n_steps = _cdiv(bp0, block_rows)
    if bp0 // align >= 2:
        # v7x has two TensorCores: prefer an even (>=2) number of 'parallel' grid steps.
        n_steps = max(2, n_steps)
        n_steps += n_steps % 2
        n_steps = min(n_steps, bp0 // align)
    block_rows = align * _cdiv(bp0, n_steps * align)
    return block_rows * n_steps, block_rows, n_steps


def lolo_kernel(x_ref, wp_ref, blp_ref, wfp_ref, bfp_ref, o_ref, *, approx):
    # x_ref : (R, 128) VMEM — lane j holds channel (j % G) of batch row*(128/G) + j//G
    # wp/blp/wfp : (G, 128) VMEM lane-pattern tables; bfp : (1, 128)
    # o_ref : (R, 128) VMEM — lane j holds kernel (j % G) of the same batch element
    G = wp_ref.shape[0]
    lanes = x_ref.shape[1]
    hops = max(G.bit_length() - 1, 0)  # log2(G)

    x = x_ref[...]
    if x.dtype != jnp.float32:
        x = x.astype(jnp.float32)
    wp, blp, wfp = wp_ref[...], blp_ref[...], wfp_ref[...]
    lane_mod = jax.lax.broadcasted_iota(jnp.int32, (1, lanes), 1) % G
    one = jnp.float32(1.0)

    acc = None
    for k in range(G):  # small static K (padded to G) -> unrolled
        # Lane-wise per-channel Linear(1, K), slice k:  z[b, c] = x[b, c]*W[c, k] + Bl[c, k]
        z = x * wp[k:k + 1, :] + blp[k:k + 1, :]
        denom = one + z * z
        y = pl.reciprocal(denom, approx=True) if approx else one / denom   # 'invsquare'
        t = y * wfp[k:k + 1, :]                                            # * Wf[k, c]
        # Sum the G adjacent channel lanes of each batch group (result lands at lane g*G).
        for s in range(hops):
            d = 1 << s
            t = t + pltpu.roll(t, shift=lanes - d, axis=1)   # t[i] += t[i + d]  (XLU)
        if k:
            t = pltpu.roll(t, shift=k, axis=1)               # place group sum at lane g*G + k
        acc = t if acc is None else jnp.where(lane_mod == k, t, acc)
    o_ref[...] = (acc + bfp_ref[...]).astype(o_ref.dtype)     # + bf[k], single lane-dense store


def lolo_forward(x, w, bl, wf, bf, *, approx_reciprocal=False, target_in_bytes=1 << 20):
    """LoLoLayer forward (fusion='channels').

    x: (B, C); w, bl: (C, K); wf: (K, C); bf: (K,) or (1, K). Returns (B, K) in x.dtype.
    """
    B, C = x.shape
    K = w.shape[1]
    f32 = jnp.float32

    G = _next_pow2(max(C, K))          # lane-group size; always divides 128
    if G > _LANES:
        # TODO(synk): fall back to a channel-tiled layout for n_channels/n_kernels > 128.
        raise NotImplementedError("n_channels/n_kernels > 128 not supported")
    reps = _LANES // G

    # Zero-padded (G, G) parameter tables -> tiny (G, 128) lane-pattern tables (built once).
    w_p = jnp.zeros((G, G), f32).at[:C, :K].set(w.astype(f32))
    bl_p = jnp.zeros((G, G), f32).at[:C, :K].set(bl.astype(f32))
    wf_p = jnp.zeros((G, G), f32).at[:K, :C].set(wf.astype(f32))
    bf_p = jnp.zeros((G,), f32).at[:K].set(bf.reshape(-1).astype(f32))
    w_pat = jnp.tile(w_p.T, (1, reps))                  # [k, lane] = W[lane % G, k]
    bl_pat = jnp.tile(bl_p.T, (1, reps))                # [k, lane] = Bl[lane % G, k]
    wf_pat = jnp.tile(wf_p, (1, reps))                  # [k, lane] = Wf[k, lane % G]
    bf_pat = jnp.tile(bf_p, reps).reshape(1, _LANES)    # [0, lane] = bf[lane % G]

    Bp, block_rows, n_steps = _plan_grid(B, G, target_in_bytes=target_in_bytes)

    # TODO(synk): keep bf16 inputs in bf16 end-to-end (needs 16-row tiles on the input too).
    xf = x if x.dtype == f32 else x.astype(f32)
    pad_b, pad_c = Bp - B, G - C
    if pad_b or pad_c:
        # Padded rows/channels compute harmless finite values and are dropped below.
        xf = jnp.pad(xf, ((0, pad_b), (0, pad_c)))

    # Free, relayout-less reshape: channels interleaved along the 128-lane axis.
    rows_total = Bp * G // _LANES
    x_il = xf.reshape(rows_total, _LANES)
    r_blk = block_rows * G // _LANES

    out_il = pl.pallas_call(
        functools.partial(lolo_kernel, approx=approx_reciprocal),
        out_shape=jax.ShapeDtypeStruct((rows_total, _LANES), x.dtype),
        grid_spec=pltpu.PrefetchScalarGridSpec(
            num_scalar_prefetch=0,
            grid=(n_steps,),
            in_specs=[
                pl.BlockSpec((r_blk, _LANES), lambda i: (i, 0)),   # x, interleaved batch tile
                pl.BlockSpec((G, _LANES), lambda i: (0, 0)),       # W lane pattern
                pl.BlockSpec((G, _LANES), lambda i: (0, 0)),       # Bl lane pattern
                pl.BlockSpec((G, _LANES), lambda i: (0, 0)),       # Wf lane pattern
                pl.BlockSpec((1, _LANES), lambda i: (0, 0)),       # bf lane pattern
            ],
            out_specs=pl.BlockSpec((r_blk, _LANES), lambda i: (i, 0)),
        ),
        compiler_params=pltpu.CompilerParams(
            dimension_semantics=("parallel",),      # megacore-shardable batch axis (v7x)
            vmem_limit_bytes=32 * 1024 * 1024,      # safe on v5e/v6e/v7x
        ),
    )(x_il, w_pat, bl_pat, wf_pat, bf_pat)

    out = out_il.reshape(Bp, G)                     # free reshape back to (batch, kernel)
    if pad_b or G != K:
        out = out[:B, :K]
    return out


def lolo_ref(x, w, bl, wf, bf):
    """Pure-JAX reference mirroring the PyTorch forward (fusion='channels')."""
    pre = x[:, :, None].astype(jnp.float32) * w[None, :, :] + bl[None, :, :]  # (B, C, K)
    y = 1.0 / (1.0 + pre * pre)                                               # invsquare
    return jnp.einsum("bck,kc->bk", y, wf) + bf.reshape(1, -1)                # (B, K)


if __name__ == "__main__":
    master = jax.random.PRNGKey(0)

    def run_case(batch, n_channels, n_kernels, key, *, approx=False, rtol=1e-5, atol=1e-5):
        kx, kw, kbl, kwf, kbf = jax.random.split(key, 5)
        w = jax.random.uniform(kw, (n_channels, n_kernels), jnp.float32, -1.0, 1.0)
        bl = jax.random.uniform(kbl, (n_channels, n_kernels), jnp.float32, -1.0, 1.0)
        wf = jax.random.uniform(kwf, (n_kernels, n_channels), jnp.float32, -1.0, 1.0)
        bf = jax.random.uniform(kbf, (n_kernels,), jnp.float32, -1.0, 1.0)
        x = jax.random.normal(kx, (batch, n_channels), jnp.float32)
        out = jax.block_until_ready(
            lolo_forward(x, w, bl, wf, bf, approx_reciprocal=approx))
        ref = lolo_ref(x, w, bl, wf, bf)
        np.testing.assert_allclose(np.asarray(out), np.asarray(ref), rtol=rtol, atol=atol)

    # Case 1: C = K = 4 (divides 128) -> pure interleaved fast path; batch not tile-aligned
    # (exercises batch padding and the 2-step 'parallel' grid). Exact reciprocal: tight check.
    run_case(4000, 4, 4, jax.random.fold_in(master, 0))
    # Same case through the EUP approximate-reciprocal path: looser tolerance.
    run_case(4000, 4, 4, jax.random.fold_in(master, 0), approx=True, rtol=5e-2, atol=5e-2)
    # Case 2: module defaults C = K = 3 -> exercises group padding to G=4 + output slice-back.
    run_case(1000, 3, 3, jax.random.fold_in(master, 1))

    print("KERNEL_OK")
</pallas_src>

<mosaic_0001>
module attributes {stable_mosaic.version = 11 : i64} {
  func.func @lolo_kernel(%arg0: i32, %arg1: memref<64x128xf32, #tpu.memory_space<vmem>>, %arg2: memref<4x128xf32, #tpu.memory_space<vmem>>, %arg3: memref<4x128xf32, #tpu.memory_space<vmem>>, %arg4: memref<4x128xf32, #tpu.memory_space<vmem>>, %arg5: memref<1x128xf32, #tpu.memory_space<vmem>>, %arg6: memref<64x128xf32, #tpu.memory_space<vmem>>) attributes {dimension_semantics = [#tpu.dimension_semantics<parallel>], iteration_bounds = array<i64: 2>, scalar_prefetch = 0 : i64, scratch_operands = 0 : i64, tpu.core_type = #tpu.core_type<tc>, window_params = [{transform_indices = @transform_0, window_bounds = array<i64: 64, 128>}, {pipeline_mode = #tpu.pipeline_mode<synchronous>, transform_indices = @transform_1, window_bounds = array<i64: 4, 128>}, {pipeline_mode = #tpu.pipeline_mode<synchronous>, transform_indices = @transform_2, window_bounds = array<i64: 4, 128>}, {pipeline_mode = #tpu.pipeline_mode<synchronous>, transform_indices = @transform_3, window_bounds = array<i64: 4, 128>}, {pipeline_mode = #tpu.pipeline_mode<synchronous>, transform_indices = @transform_4, window_bounds = array<i64: 1, 128>}, {transform_indices = @transform_5, window_bounds = array<i64: 64, 128>}]} {
    %c0 = arith.constant 0 : index
    %c0_0 = arith.constant 0 : index
    %0 = vector.load %arg1[%c0, %c0_0] : memref<64x128xf32, #tpu.memory_space<vmem>>, vector<64x128xf32>
    %c0_1 = arith.constant 0 : index
    %c0_2 = arith.constant 0 : index
    %1 = vector.load %arg2[%c0_1, %c0_2] : memref<4x128xf32, #tpu.memory_space<vmem>>, vector<4x128xf32>
    %c0_3 = arith.constant 0 : index
    %c0_4 = arith.constant 0 : index
    %2 = vector.load %arg3[%c0_3, %c0_4] : memref<4x128xf32, #tpu.memory_space<vmem>>, vector<4x128xf32>
    %c0_5 = arith.constant 0 : index
    %c0_6 = arith.constant 0 : index
    %3 = vector.load %arg4[%c0_5, %c0_6] : memref<4x128xf32, #tpu.memory_space<vmem>>, vector<4x128xf32>
    %4 = tpu.iota {dimensions = array<i32: 1>} : vector<1x128xi32>
    %c4_i32 = arith.constant 4 : i32
    %c0_i32 = arith.constant 0 : i32
    %5 = arith.cmpi eq, %c4_i32, %c0_i32 : i32
    %c1_i32 = arith.constant 1 : i32
    %6 = arith.select %5, %c1_i32, %c4_i32 : i32
    %7 = vector.broadcast %6 : i32 to vector<1x128xi32>
    %8 = arith.remsi %4, %7 : vector<1x128xi32>
    %c0_i32_7 = arith.constant 0 : i32
    %9 = vector.broadcast %c0_i32_7 : i32 to vector<1x128xi32>
    %10 = arith.cmpi ne, %8, %9 : vector<1x128xi32>
    %c0_i32_8 = arith.constant 0 : i32
    %11 = vector.broadcast %c0_i32_8 : i32 to vector<1x128xi32>
    %12 = arith.cmpi slt, %8, %11 : vector<1x128xi32>
    %c0_i32_9 = arith.constant 0 : i32
    %13 = arith.cmpi slt, %6, %c0_i32_9 : i32
    %14 = vector.broadcast %13 : i1 to vector<1x128xi1>
    %15 = vector.broadcast %14 : vector<1x128xi1> to vector<1x128xi1>
    %16 = arith.xori %12, %15 : vector<1x128xi1>
    %17 = arith.andi %16, %10 : vector<1x128xi1>
    %18 = vector.broadcast %6 : i32 to vector<1x128xi32>
    %19 = arith.addi %8, %18 : vector<1x128xi32>
    %20 = arith.select %17, %19, %8 : vector<1x128xi1>, vector<1x128xi32>
    %21 = vector.extract_strided_slice %1 {offsets = [0, 0], sizes = [1, 128], strides = [1, 1]} : vector<4x128xf32> to vector<1x128xf32>
    %22 = vector.broadcast %21 : vector<1x128xf32> to vector<64x128xf32>
    %23 = arith.mulf %0, %22 : vector<64x128xf32>
    %24 = vector.extract_strided_slice %2 {offsets = [0, 0], sizes = [1, 128], strides = [1, 1]} : vector<4x128xf32> to vector<1x128xf32>
    %25 = vector.broadcast %24 : vector<1x128xf32> to vector<64x128xf32>
    %26 = arith.addf %23, %25 : vector<64x128xf32>
    %27 = arith.mulf %26, %26 : vector<64x128xf32>
    %cst = arith.constant 1.000000e+00 : f32
    %28 = vector.broadcast %cst : f32 to vector<64x128xf32>
    %29 = arith.addf %28, %27 : vector<64x128xf32>
    %cst_10 = arith.constant 1.000000e+00 : f32
    %30 = vector.broadcast %cst_10 : f32 to vector<64x128xf32>
    %31 = arith.divf %30, %29 : vector<64x128xf32>
    %32 = vector.extract_strided_slice %3 {offsets = [0, 0], sizes = [1, 128], strides = [1, 1]} : vector<4x128xf32> to vector<1x128xf32>
    %33 = vector.broadcast %32 : vector<1x128xf32> to vector<64x128xf32>
    %34 = arith.mulf %31, %33 : vector<64x128xf32>
    %c127_i32 = arith.constant 127 : i32
    %35 = tpu.dynamic_rotate %34 by %c127_i32 dim 1 : vector<64x128xf32>, i32 -> vector<64x128xf32>
    %36 = arith.addf %34, %35 : vector<64x128xf32>
    %c126_i32 = arith.constant 126 : i32
    %37 = tpu.dynamic_rotate %36 by %c126_i32 dim 1 : vector<64x128xf32>, i32 -> vector<64x128xf32>
    %38 = arith.addf %36, %37 : vector<64x128xf32>
    %39 = vector.extract_strided_slice %1 {offsets = [1, 0], sizes = [1, 128], strides = [1, 1]} : vector<4x128xf32> to vector<1x128xf32>
    %40 = vector.broadcast %39 : vector<1x128xf32> to vector<64x128xf32>
    %41 = arith.mulf %0, %40 : vector<64x128xf32>
    %42 = vector.extract_strided_slice %2 {offsets = [1, 0], sizes = [1, 128], strides = [1, 1]} : vector<4x128xf32> to vector<1x128xf32>
    %43 = vector.broadcast %42 : vector<1x128xf32> to vector<64x128xf32>
    %44 = arith.addf %41, %43 : vector<64x128xf32>
    %45 = arith.mulf %44, %44 : vector<64x128xf32>
    %cst_11 = arith.constant 1.000000e+00 : f32
    %46 = vector.broadcast %cst_11 : f32 to vector<64x128xf32>
    %47 = arith.addf %46, %45 : vector<64x128xf32>
    %cst_12 = arith.constant 1.000000e+00 : f32
    %48 = vector.broadcast %cst_12 : f32 to vector<64x128xf32>
    %49 = arith.divf %48, %47 : vector<64x128xf32>
    %50 = vector.extract_strided_slice %3 {offsets = [1, 0], sizes = [1, 128], strides = [1, 1]} : vector<4x128xf32> to vector<1x128xf32>
    %51 = vector.broadcast %50 : vector<1x128xf32> to vector<64x128xf32>
    %52 = arith.mulf %49, %51 : vector<64x128xf32>
    %c127_i32_13 = arith.constant 127 : i32
    %53 = tpu.dynamic_rotate %52 by %c127_i32_13 dim 1 : vector<64x128xf32>, i32 -> vector<64x128xf32>
    %54 = arith.addf %52, %53 : vector<64x128xf32>
    %c126_i32_14 = arith.constant 126 : i32
    %55 = tpu.dynamic_rotate %54 by %c126_i32_14 dim 1 : vector<64x128xf32>, i32 -> vector<64x128xf32>
    %56 = arith.addf %54, %55 : vector<64x128xf32>
    %c1_i32_15 = arith.constant 1 : i32
    %57 = tpu.dynamic_rotate %56 by %c1_i32_15 dim 1 : vector<64x128xf32>, i32 -> vector<64x128xf32>
    %c1_i32_16 = arith.constant 1 : i32
    %58 = vector.broadcast %c1_i32_16 : i32 to vector<1x128xi32>
    %59 = arith.cmpi eq, %20, %58 : vector<1x128xi32>
    %60 = vector.shape_cast %59 : vector<1x128xi1> to vector<1x128xi1>
    %61 = vector.broadcast %60 : vector<1x128xi1> to vector<64x128xi1>
    %62 = arith.select %61, %57, %38 : vector<64x128xi1>, vector<64x128xf32>
    %63 = vector.extract_strided_slice %1 {offsets = [2, 0], sizes = [1, 128], strides = [1, 1]} : vector<4x128xf32> to vector<1x128xf32>
    %64 = vector.broadcast %63 : vector<1x128xf32> to vector<64x128xf32>
    %65 = arith.mulf %0, %64 : vector<64x128xf32>
    %66 = vector.extract_strided_slice %2 {offsets = [2, 0], sizes = [1, 128], strides = [1, 1]} : vector<4x128xf32> to vector<1x128xf32>
    %67 = vector.broadcast %66 : vector<1x128xf32> to vector<64x128xf32>
    %68 = arith.addf %65, %67 : vector<64x128xf32>
    %69 = arith.mulf %68, %68 : vector<64x128xf32>
    %cst_17 = arith.constant 1.000000e+00 : f32
    %70 = vector.broadcast %cst_17 : f32 to vector<64x128xf32>
    %71 = arith.addf %70, %69 : vector<64x128xf32>
    %cst_18 = arith.constant 1.000000e+00 : f32
    %72 = vector.broadcast %cst_18 : f32 to vector<64x128xf32>
    %73 = arith.divf %72, %71 : vector<64x128xf32>
    %74 = vector.extract_strided_slice %3 {offsets = [2, 0], sizes = [1, 128], strides = [1, 1]} : vector<4x128xf32> to vector<1x128xf32>
    %75 = vector.broadcast %74 : vector<1x128xf32> to vector<64x128xf32>
    %76 = arith.mulf %73, %75 : vector<64x128xf32>
    %c127_i32_19 = arith.constant 127 : i32
    %77 = tpu.dynamic_rotate %76 by %c127_i32_19 dim 1 : vector<64x128xf32>, i32 -> vector<64x128xf32>
    %78 = arith.addf %76, %77 : vector<64x128xf32>
    %c126_i32_20 = arith.constant 126 : i32
    %79 = tpu.dynamic_rotate %78 by %c126_i32_20 dim 1 : vector<64x128xf32>, i32 -> vector<64x128xf32>
    %80 = arith.addf %78, %79 : vector<64x128xf32>
    %c2_i32 = arith.constant 2 : i32
    %81 = tpu.dynamic_rotate %80 by %c2_i32 dim 1 : vector<64x128xf32>, i32 -> vector<64x128xf32>
    %c2_i32_21 = arith.constant 2 : i32
    %82 = vector.broadcast %c2_i32_21 : i32 to vector<1x128xi32>
    %83 = arith.cmpi eq, %20, %82 : vector<1x128xi32>
    %84 = vector.shape_cast %83 : vector<1x128xi1> to vector<1x128xi1>
    %85 = vector.broadcast %84 : vector<1x128xi1> to vector<64x128xi1>
    %86 = arith.select %85, %81, %62 : vector<64x128xi1>, vector<64x128xf32>
    %87 = vector.extract_strided_slice %1 {offsets = [3, 0], sizes = [1, 128], strides = [1, 1]} : vector<4x128xf32> to vector<1x128xf32>
    %88 = vector.broadcast %87 : vector<1x128xf32> to vector<64x128xf32>
    %89 = arith.mulf %0, %88 : vector<64x128xf32>
    %90 = vector.extract_strided_slice %2 {offsets = [3, 0], sizes = [1, 128], strides = [1, 1]} : vector<4x128xf32> to vector<1x128xf32>
    %91 = vector.broadcast %90 : vector<1x128xf32> to vector<64x128xf32>
    %92 = arith.addf %89, %91 : vector<64x128xf32>
    %93 = arith.mulf %92, %92 : vector<64x128xf32>
    %cst_22 = arith.constant 1.000000e+00 : f32
    %94 = vector.broadcast %cst_22 : f32 to vector<64x128xf32>
    %95 = arith.addf %94, %93 : vector<64x128xf32>
    %cst_23 = arith.constant 1.000000e+00 : f32
    %96 = vector.broadcast %cst_23 : f32 to vector<64x128xf32>
    %97 = arith.divf %96, %95 : vector<64x128xf32>
    %98 = vector.extract_strided_slice %3 {offsets = [3, 0], sizes = [1, 128], strides = [1, 1]} : vector<4x128xf32> to vector<1x128xf32>
    %99 = vector.broadcast %98 : vector<1x128xf32> to vector<64x128xf32>
    %100 = arith.mulf %97, %99 : vector<64x128xf32>
    %c127_i32_24 = arith.constant 127 : i32
    %101 = tpu.dynamic_rotate %100 by %c127_i32_24 dim 1 : vector<64x128xf32>, i32 -> vector<64x128xf32>
    %102 = arith.addf %100, %101 : vector<64x128xf32>
    %c126_i32_25 = arith.constant 126 : i32
    %103 = tpu.dynamic_rotate %102 by %c126_i32_25 dim 1 : vector<64x128xf32>, i32 -> vector<64x128xf32>
    %104 = arith.addf %102, %103 : vector<64x128xf32>
    %c3_i32 = arith.constant 3 : i32
    %105 = tpu.dynamic_rotate %104 by %c3_i32 dim 1 : vector<64x128xf32>, i32 -> vector<64x128xf32>
    %c3_i32_26 = arith.constant 3 : i32
    %106 = vector.broadcast %c3_i32_26 : i32 to vector<1x128xi32>
    %107 = arith.cmpi eq, %20, %106 : vector<1x128xi32>
    %108 = vector.shape_cast %107 : vector<1x128xi1> to vector<1x128xi1>
    %109 = vector.broadcast %108 : vector<1x128xi1> to vector<64x128xi1>
    %110 = arith.select %109, %105, %86 : vector<64x128xi1>, vector<64x128xf32>
    %c0_27 = arith.constant 0 : index
    %c0_28 = arith.constant 0 : index
    %111 = vector.load %arg5[%c0_27, %c0_28] : memref<1x128xf32, #tpu.memory_space<vmem>>, vector<1x128xf32>
    %112 = vector.broadcast %111 : vector<1x128xf32> to vector<64x128xf32>
    %113 = arith.addf %110, %112 : vector<64x128xf32>
    %c0_29 = arith.constant 0 : index
    %c0_30 = arith.constant 0 : index
    %114 = vector.load %arg6[%c0_29, %c0_30] : memref<64x128xf32, #tpu.memory_space<vmem>>, vector<64x128xf32>
    tpu.vector_store %arg6[%c0_29, %c0_30], %113 {strides = array<i32>} : memref<64x128xf32, #tpu.memory_space<vmem>>, vector<64x128xf32>,
    return
  }
  func.func @transform_0(%arg0: i32) -> (i32, i32) {
    %c0_i32 = arith.constant 0 : i32
    %c0_i32_0 = arith.constant 0 : i32
    return %arg0, %c0_i32 : i32, i32
  }
  func.func @transform_1(%arg0: i32) -> (i32, i32) {
    %c0_i32 = arith.constant 0 : i32
    %c0_i32_0 = arith.constant 0 : i32
    %c0_i32_1 = arith.constant 0 : i32
    return %c0_i32, %c0_i32_0 : i32, i32
  }
  func.func @transform_2(%arg0: i32) -> (i32, i32) {
    %c0_i32 = arith.constant 0 : i32
    %c0_i32_0 = arith.constant 0 : i32
    %c0_i32_1 = arith.constant 0 : i32
    return %c0_i32, %c0_i32_0 : i32, i32
  }
  func.func @transform_3(%arg0: i32) -> (i32, i32) {
    %c0_i32 = arith.constant 0 : i32
    %c0_i32_0 = arith.constant 0 : i32
    %c0_i32_1 = arith.constant 0 : i32
    return %c0_i32, %c0_i32_0 : i32, i32
  }
  func.func @transform_4(%arg0: i32) -> (i32, i32) {
    %c0_i32 = arith.constant 0 : i32
    %c0_i32_0 = arith.constant 0 : i32
    %c0_i32_1 = arith.constant 0 : i32
    return %c0_i32, %c0_i32_0 : i32, i32
  }
  func.func @transform_5(%arg0: i32) -> (i32, i32) {
    %c0_i32 = arith.constant 0 : i32
    %c0_i32_0 = arith.constant 0 : i32
    return %arg0, %c0_i32 : i32, i32
  }
}

</mosaic_0001>

<llo_original>
// kernel: tpu_custom_call.1
$region0: #{tpu_custom_call.1}
  #allocation0 [shape = 'u32[]', space=smem, size = 0x4, offset = 0x4, fixed_abs, tag = 'smem constant byte address 0x4 - core index']
  #allocation1 [shape = 'u32[144,128]{1,0:T(1,128)}', space=vmem, size = 0x12000, scoped, tag = 'internal scratch']
  %s0 = inlined_call_operand.hbm [shape: f32[128,128], index: 0, kind: input, shape index: {}]
  %s1 = inlined_call_operand.hbm [shape: f32[4,128], index: 1, kind: input, shape index: {}]
  %s2 = inlined_call_operand.vmem [shape: f32[4,128], index: 2, kind: input, shape index: {}]
  %s3 = inlined_call_operand.vmem [shape: f32[4,128], index: 3, kind: input, shape index: {}]
  %s4 = inlined_call_operand.vmem [shape: f32[1,128], index: 4, kind: input, shape index: {}]
  %s5 = inlined_call_operand.hbm [shape: f32[128,128], index: 5, kind: output, shape index: {}]
  %s6 = sld [smem:[#allocation0]]
  $region61: #{tpu_custom_call.1} parent=0
    _
  %s8 = ssub.s32 1, %s6
  %s9 = scalar_select 0, %s8, %s6
  $region1: #{tpu_custom_call.1} parent=0
    #allocation2 [shape = 'u8[65536]{0}', space=vmem, size = 0x10000, scoped, tag = 'input window, operand 0']
    #allocation3 [shape = 's32[2]{0}', space=sflag, size = 0x8, scoped, tag = 'scoped memory for tpu_custom_call.1']
    #allocation4 [shape = 's32[2]{0}', space=sflag, size = 0x8, scoped, tag = 'scoped memory for tpu_custom_call.1']
    #allocation5 [shape = 'u8[2048]{0}', space=vmem, size = 0x800, scoped, tag = 'input window, operand 1, single buffered']
    #allocation6 [shape = 's32[1]{0}', space=sflag, size = 0x4, scoped, tag = 'scoped memory for tpu_custom_call.1']
    #allocation7 [shape = 'u8[65536]{0}', space=vmem, size = 0x10000, scoped, tag = 'output window, operand 0']
    %10 = vsyncpa [#allocation3], 0
    %s11 = scalar_lea.sflag [#allocation3], 1
    %12 = vsyncpa %s11, 0
    %13 = vsyncpa [#allocation6], 0
    %14 = vsyncpa [#allocation4], 0
    %s15 = scalar_lea.sflag [#allocation4], 1
    %16 = vsyncpa %s15, 0
    loop: start=0, step=1, limit=4
    $region2: #{tpu_custom_call.1} parent=1 // loop_pre_header
      _
    $region3: #{tpu_custom_call.1} parent=1 // loop_header
      %s18 = sphi 0, %s22
      %p19 = scmp.ge.s32.totalorder %s18, 4
      %s28 = sphi 0, %s30
      %s31 = sphi 0, %s28
      %s32 = sphi 0, %s31
      %s48 = sphi 0, %s32
      %s52 = sphi 0, %s52
      %s54 = sphi 0, %s52
      %s55 = sphi 0, %s54
      %s69 = sphi 0, %s55
      %s73 = sphi 0, %s73
      %s75 = sphi 0, %s73
      %s76 = sphi 0, %s75
      %s90 = sphi 0, %s76
      %s94 = sphi 0, %s94
      %s96 = sphi 0, %s94
      %s97 = sphi 0, %s96
      %s111 = sphi 0, %s97
      %s115 = sphi 0, %s115
      %s117 = sphi 0, %s115
      %s118 = sphi 0, %s117
      %s132 = sphi 0, %s118
      %s138 = sphi 0, %s140
      %s141 = sphi 0, %s138
      %s142 = sphi 0, %s141
      %s158 = sphi 0, %s142
    $region4: #{tpu_custom_call.1} parent=1 // loop_header_branch
      %21 = sbr.rel (%p19) target = $region8
    $region5: #{tpu_custom_call.1} parent=1 // loop_body
      %s23 = ssub.s32 %s18, 1
      %s24 = ssub.s32 %s18, 2
      %s25 = sadd.s32 %s18, 1
      %s26 = ssub.s32 %s18, %s25
      %p27 = scmp.eq.s32.totalorder %s26, 0
      %s29 = sadd.s32 %s28, 1
      %s30 = scalar_select %p27, %s28, %s29
      %p33 = pneg %p27
      %p34 = scmp.eq.s32.totalorder %s18, 1
      %p35 = por %p33, %p34
      %p36 = scmp.ne.s32.totalorder %s28, %s31
      %p37 = scmp.eq.s32.totalorder %s18, 0
      %p38 = por %p36, %p37
      %p39 = scmp.ne.s32.totalorder %s28, %s31
      %p40 = scmp.eq.s32.totalorder %s23, 1
      %p41 = por %p39, %p40
      %p42 = scmp.ne.s32.totalorder %s31, %s32
      %p43 = scmp.eq.s32.totalorder %s23, 0
      %p44 = por %p42, %p43
      %p45 = scmp.ne.s32.totalorder %s31, %s32
      %p46 = scmp.eq.s32.totalorder %s24, 1
      %p47 = por %p45, %p46
      %p49 = scmp.ne.s32.totalorder %s32, %s48
      %p50 = scmp.eq.s32.totalorder %s24, 0
      %p51 = por %p49, %p50
      %s53 = sadd.s32 %s52, 1
      %p56 = scmp.eq.s32.totalorder %s18, 1
      %p57 = scmp.ne.s32.totalorder %s52, %s54
      %p58 = scmp.eq.s32.totalorder %s18, 0
      %p59 = por %p57, %p58
      %p60 = scmp.ne.s32.totalorder %s52, %s54
      %p61 = scmp.eq.s32.totalorder %s23, 1
      %p62 = por %p60, %p61
      %p63 = scmp.ne.s32.totalorder %s54, %s55
      %p64 = scmp.eq.s32.totalorder %s23, 0
      %p65 = por %p63, %p64
      %p66 = scmp.ne.s32.totalorder %s54, %s55
      %p67 = scmp.eq.s32.totalorder %s24, 1
      %p68 = por %p66, %p67
      %p70 = scmp.ne.s32.totalorder %s55, %s69
      %p71 = scmp.eq.s32.totalorder %s24, 0
      %p72 = por %p70, %p71
      %s74 = sadd.s32 %s73, 1
      %p77 = scmp.eq.s32.totalorder %s18, 1
      %p78 = scmp.ne.s32.totalorder %s73, %s75
      %p79 = scmp.eq.s32.totalorder %s18, 0
      %p80 = por %p78, %p79
      %p81 = scmp.ne.s32.totalorder %s73, %s75
      %p82 = scmp.eq.s32.totalorder %s23, 1
      %p83 = por %p81, %p82
      %p84 = scmp.ne.s32.totalorder %s75, %s76
      %p85 = scmp.eq.s32.totalorder %s23, 0
      %p86 = por %p84, %p85
      %p87 = scmp.ne.s32.totalorder %s75, %s76
      %p88 = scmp.eq.s32.totalorder %s24, 1
      %p89 = por %p87, %p88
      %p91 = scmp.ne.s32.totalorder %s76, %s90
      %p92 = scmp.eq.s32.totalorder %s24, 0
      %p93 = por %p91, %p92
      %s95 = sadd.s32 %s94, 1
      %p98 = scmp.eq.s32.totalorder %s18, 1
      %p99 = scmp.ne.s32.totalorder %s94, %s96
      %p100 = scmp.eq.s32.totalorder %s18, 0
      %p101 = por %p99, %p100
      %p102 = scmp.ne.s32.totalorder %s94, %s96
      %p103 = scmp.eq.s32.totalorder %s23, 1
      %p104 = por %p102, %p103
      %p105 = scmp.ne.s32.totalorder %s96, %s97
      %p106 = scmp.eq.s32.totalorder %s23, 0
      %p107 = por %p105, %p106
      %p108 = scmp.ne.s32.totalorder %s96, %s97
      %p109 = scmp.eq.s32.totalorder %s24, 1
      %p110 = por %p108, %p109
      %p112 = scmp.ne.s32.totalorder %s97, %s111
      %p113 = scmp.eq.s32.totalorder %s24, 0
      %p114 = por %p112, %p113
      %s116 = sadd.s32 %s115, 1
      %p119 = scmp.eq.s32.totalorder %s18, 1
      %p120 = scmp.ne.s32.totalorder %s115, %s117
      %p121 = scmp.eq.s32.totalorder %s18, 0
      %p122 = por %p120, %p121
      %p123 = scmp.ne.s32.totalorder %s115, %s117
      %p124 = scmp.eq.s32.totalorder %s23, 1
      %p125 = por %p123, %p124
      %p126 = scmp.ne.s32.totalorder %s117, %s118
      %p127 = scmp.eq.s32.totalorder %s23, 0
      %p128 = por %p126, %p127
      %p129 = scmp.ne.s32.totalorder %s117, %s118
      %p130 = scmp.eq.s32.totalorder %s24, 1
      %p131 = por %p129, %p130
      %p133 = scmp.ne.s32.totalorder %s118, %s132
      %p134 = scmp.eq.s32.totalorder %s24, 0
      %p135 = por %p133, %p134
      %s136 = ssub.s32 %s18, %s25
      %p137 = scmp.eq.s32.totalorder %s136, 0
      %s139 = sadd.s32 %s138, 1
      %s140 = scalar_select %p137, %s138, %s139
      %p143 = pneg %p137
      %p144 = scmp.eq.s32.totalorder %s18, 1
      %p145 = por %p143, %p144
      %p146 = scmp.ne.s32.totalorder %s138, %s141
      %p147 = scmp.eq.s32.totalorder %s18, 0
      %p148 = por %p146, %p147
      %p149 = scmp.ne.s32.totalorder %s138, %s141
      %p150 = scmp.eq.s32.totalorder %s23, 1
      %p151 = por %p149, %p150
      %p152 = scmp.ne.s32.totalorder %s141, %s142
      %p153 = scmp.eq.s32.totalorder %s23, 0
      %p154 = por %p152, %p153
      %p155 = scmp.ne.s32.totalorder %s141, %s142
      %p156 = scmp.eq.s32.totalorder %s24, 1
      %p157 = por %p155, %p156
      %p159 = scmp.ne.s32.totalorder %s142, %s158
      %p160 = scmp.eq.s32.totalorder %s24, 0
      %p161 = por %p159, %p160
      %p162 = scmp.le.s32.totalorder 1, %s18
      %p163 = scmp.lt.s32.totalorder %s18, 3
      %p164 = pnand %p162, %p163
      %p165 = pneg %p164
      // Predicated region
      $region9: #{tpu_custom_call.1} parent=5 // pred_check
        _
      $region10: #{tpu_custom_call.1} parent=5 // pred_check_branch
        %167 = sbr.rel (%p164) target = $region12
      $region11: #{tpu_custom_call.1} parent=5 // pred_region
        %s168 = ssub.s32 %s18, 1
        // Predicated region
        $region13: #{tpu_custom_call.1} parent=11 // pred_check
          %p169 = pneg %p65
        $region14: #{tpu_custom_call.1} parent=11 // pred_check_branch
          %171 = sbr.rel (%p169) target = $region16
        $region15: #{tpu_custom_call.1} parent=11 // pred_region
          %s173 = ssub.s32 64, 64
          %174 = vsyncadd [#allocation6], %s173
          %s176 = sshll.u32 [#allocation5], 4
          %s177 = int_to_ptr.vmem [resolvable:$true] %s176
          %179 = dma.hbm_to_vmem [thread:$0]  %s1, 64, %s177, [#allocation6]
        $region16: #{tpu_custom_call.1} parent=11 // pred_fallthru
          _
        // Predicated region
        $region17: #{tpu_custom_call.1} parent=11 // pred_check
          %p180 = pneg %p86
        $region18: #{tpu_custom_call.1} parent=11 // pred_check_branch
          %182 = sbr.rel (%p180) target = $region20
        $region19: #{tpu_custom_call.1} parent=11 // pred_region
          _
        $region20: #{tpu_custom_call.1} parent=11 // pred_fallthru
          _
        // Predicated region
        $region21: #{tpu_custom_call.1} parent=11 // pred_check
          %p183 = pneg %p107
        $region22: #{tpu_custom_call.1} parent=11 // pred_check_branch
          %185 = sbr.rel (%p183) target = $region24
        $region23: #{tpu_custom_call.1} parent=11 // pred_region
          _
        $region24: #{tpu_custom_call.1} parent=11 // pred_fallthru
          _
        // Predicated region
        $region25: #{tpu_custom_call.1} parent=11 // pred_check
          %p186 = pneg %p128
        $region26: #{tpu_custom_call.1} parent=11 // pred_check_branch
          %188 = sbr.rel (%p186) target = $region28
        $region27: #{tpu_custom_call.1} parent=11 // pred_region
          _
        $region28: #{tpu_custom_call.1} parent=11 // pred_fallthru
          _
      $region12: #{tpu_custom_call.1} parent=5 // pred_fallthru
        _
      %p189 = scmp.lt.s32.totalorder %s18, 2
      // Predicated region
      $region29: #{tpu_custom_call.1} parent=5 // pred_check
        %p190 = pneg %p189
      $region30: #{tpu_custom_call.1} parent=5 // pred_check_branch
        %192 = sbr.rel (%p190) target = $region32
      $region31: #{tpu_custom_call.1} parent=5 // pred_region
        // Predicated region
        $region33: #{tpu_custom_call.1} parent=31 // pred_check
          %p193 = pneg %p38
        $region34: #{tpu_custom_call.1} parent=31 // pred_check_branch
          %195 = sbr.rel (%p193) target = $region36
        $region35: #{tpu_custom_call.1} parent=31 // pred_region
          %s196 = sand.u32 %s28, 1
          %s197 = scalar_lea.sflag [#allocation3], %s196
          %s198 = sand.u32 %s28, 1
          %s199 = smul.addr %s198, 64
          %s200 = scalar_lea.vmem [#allocation2], %s199
          %s201 = smul.u32 8, %s18
          %s203 = ssub.s32 1024, 1024
          %204 = vsyncadd %s197, %s203
          %s205 = smul.addr %s201, 128
          %s206 = scalar_lea.hbm %s0, %s205
          %s207 = sshll.u32 %s200, 4
          %s208 = int_to_ptr.vmem [resolvable:$true] %s207
          %213 = dma.hbm_to_vmem [thread:$0]  %s206, 1024, %s208, %s197, 128, 128, 8
        $region36: #{tpu_custom_call.1} parent=31 // pred_fallthru
          _
      $region32: #{tpu_custom_call.1} parent=5 // pred_fallthru
        _
      %p214 = scmp.le.s32.totalorder 1, %s18
      %p215 = scmp.lt.s32.totalorder %s18, 3
      %p216 = pnand %p214, %p215
      %p217 = pneg %p216
      // Predicated region
      $region37: #{tpu_custom_call.1} parent=5 // pred_check
        _
      $region38: #{tpu_custom_call.1} parent=5 // pred_check_branch
        %219 = sbr.rel (%p216) target = $region40
      $region39: #{tpu_custom_call.1} parent=5 // pred_region
        %s220 = ssub.s32 %s18, 1
        %s221 = sand.u32 %s31, 1
        %s222 = scalar_lea.sflag [#allocation3], %s221
        %s223 = sand.u32 %s31, 1
        %s224 = smul.addr %s223, 64
        %s225 = scalar_lea.vmem [#allocation2], %s224
        // Predicated region
        $region41: #{tpu_custom_call.1} parent=39 // pred_check
          %p226 = pneg %p44
        $region42: #{tpu_custom_call.1} parent=39 // pred_check_branch
          %228 = sbr.rel (%p226) target = $region44
        $region43: #{tpu_custom_call.1} parent=39 // pred_region
          %229 = dma.done %s222, 1024
        $region44: #{tpu_custom_call.1} parent=39 // pred_fallthru
          _
        // Predicated region
        $region45: #{tpu_custom_call.1} parent=39 // pred_check
          %p230 = pneg %p65
        $region46: #{tpu_custom_call.1} parent=39 // pred_check_branch
          %232 = sbr.rel (%p230) target = $region48
        $region47: #{tpu_custom_call.1} parent=39 // pred_region
          %233 = dma.done [#allocation6], 64
        $region48: #{tpu_custom_call.1} parent=39 // pred_fallthru
          _
        %s234 = sand.u32 %s31, 1
        %s235 = scalar_lea.sflag [#allocation3], %s234
        %s236 = sand.u32 %s31, 1
        %s237 = smul.addr %s236, 64
        %s238 = scalar_lea.vmem [#allocation2], %s237
        %p239 = pneg %p44
        %p240 = pneg %p41
        %p241 = pneg %p65
        %p242 = pneg %p62
        %p243 = pneg %p86
        %p244 = pneg %p83
        %p245 = pneg %p107
        %p246 = pneg %p104
        %p247 = pneg %p128
        %p248 = pneg %p125
        %p249 = pneg %p154
        %p250 = pneg %p151
        %s251 = sand.u32 %s141, 1
        %s252 = scalar_lea.sflag [#allocation4], %s251
        %s253 = sand.u32 %s141, 1
        %s254 = smul.addr %s253, 64
        %s255 = scalar_lea.vmem [#allocation7], %s254
        %s256 = smul.u32 8, %s23
        %s257 = smul.u32 8, %s23
        %v258 = vld [vmem:[%s225] sm:$0xff]
        %v259 = vld [vmem:[%s225 + $0x8] sm:$0xff]
        %v260 = vld [vmem:[%s225 + $0x10] sm:$0xff]
        %v261 = vld [vmem:[%s225 + $0x18] sm:$0xff]
        %v262 = vld [vmem:[%s225 + $0x20] sm:$0xff]
        %v263 = vld [vmem:[%s225 + $0x28] sm:$0xff]
        %v264 = vld [vmem:[%s225 + $0x30] sm:$0xff]
        %v265 = vld [vmem:[%s225 + $0x38] sm:$0xff]
        %v266 = vld [vmem:[#allocation5] sm:$0xf]
        %v267 = vld [vmem:[%s2] sm:$0xf]
        %v268 = vld [vmem:[%s3] sm:$0xf]
        %v269 = vlaneseq
        %v270 = vand.u32 %v269, 127
        %vm271 = vcmp.lt.s32.totalorder %v270, 0
        %v272 = vsub.s32 0, %v270
        %v273 = vsel %vm271, %v272, %v270
        %v274 = vshrl.u32 %v273, 2
        %v275 = vand.u32 %v273, 3
        %v276 = vsub.s32 0, %v275
        %v277 = vsel %vm271, %v276, %v275
        %vm278 = vcmp.ne.s32.totalorder %v277, 0
        %vm279 = vcmp.lt.s32.totalorder %v277, 0
        %vm280 = vmand %vm279, %vm278
        %v281 = vadd.s32 %v277, 4
        %v282 = vsel %vm280, %v281, %v277
        %v283 = vlaneseq
        %v284 = vshrl.u32 %v283, 7
        %v285 = vsub.s32 0, %v284
        %v286 = vrot.slane %v266, %v285
        %v287 = vmul.f32 %v258, %v286
        %v288 = vmul.f32 %v259, %v286
        %v289 = vmul.f32 %v260, %v286
        %v290 = vmul.f32 %v261, %v286
        %v291 = vmul.f32 %v262, %v286
        %v292 = vmul.f32 %v263, %v286
        %v293 = vmul.f32 %v264, %v286
        %v294 = vmul.f32 %v265, %v286
        %v295 = vlaneseq
        %v296 = vshrl.u32 %v295, 7
        %v297 = vsub.s32 0, %v296
        %v298 = vrot.slane %v267, %v297
        %v299 = vadd.f32 %v287, %v298
        %v300 = vadd.f32 %v288, %v298
        %v301 = vadd.f32 %v289, %v298
        %v302 = vadd.f32 %v290, %v298
        %v303 = vadd.f32 %v291, %v298
        %v304 = vadd.f32 %v292, %v298
        %v305 = vadd.f32 %v293, %v298
        %v306 = vadd.f32 %v294, %v298
        %v307 = vmul.f32 %v299, %v299
        %v308 = vmul.f32 %v300, %v300
        %v309 = vmul.f32 %v301, %v301
        %v310 = vmul.f32 %v302, %v302
        %v311 = vmul.f32 %v303, %v303
        %v312 = vmul.f32 %v304, %v304
        %v313 = vmul.f32 %v305, %v305
        %v314 = vmul.f32 %v306, %v306
        %v315 = vadd.f32 %v307, 1.0
        %v316 = vadd.f32 %v308, 1.0
        %v317 = vadd.f32 %v309, 1.0
        %v318 = vadd.f32 %v310, 1.0
        %v319 = vadd.f32 %v311, 1.0
        %v320 = vadd.f32 %v312, 1.0
        %v321 = vadd.f32 %v313, 1.0
        %v322 = vadd.f32 %v314, 1.0
        %v323 = vrcp.pop %v315
        %v324 = vmul.f32 1.0, %v323
        %v325 = vrcp.pop %v316
        %v326 = vmul.f32 1.0, %v325
        %v327 = vrcp.pop %v317
        %v328 = vmul.f32 1.0, %v327
        %v329 = vrcp.pop %v318
        %v330 = vmul.f32 1.0, %v329
        %v331 = vrcp.pop %v319
        %v332 = vmul.f32 1.0, %v331
        %v333 = vrcp.pop %v320
        %v334 = vmul.f32 1.0, %v333
        %v335 = vrcp.pop %v321
        %v336 = vmul.f32 1.0, %v335
        %v337 = vrcp.pop %v322
        %v338 = vmul.f32 1.0, %v337
        %v339 = vlaneseq
        %v340 = vshrl.u32 %v339, 7
        %v341 = vsub.s32 0, %v340
        %v342 = vrot.slane %v268, %v341
        %v343 = vmul.f32 %v324, %v342
        %v344 = vmul.f32 %v326, %v342
        %v345 = vmul.f32 %v328, %v342
        %v346 = vmul.f32 %v330, %v342
        %v347 = vmul.f32 %v332, %v342
        %v348 = vmul.f32 %v334, %v342
        %v349 = vmul.f32 %v336, %v342
        %v350 = vmul.f32 %v338, %v342
        %351 = vrot.lane.b32.xlu0 %v343, 127
        %v352 = vpop.permute.xlu0 %351
        %353 = vrot.lane.b32.xlu0 %v344, 127
        %v354 = vpop.permute.xlu0 %353
        %355 = vrot.lane.b32.xlu0 %v345, 127
        %v356 = vpop.permute.xlu0 %355
        %357 = vrot.lane.b32.xlu0 %v346, 127
        %v358 = vpop.permute.xlu0 %357
        %359 = vrot.lane.b32.xlu0 %v347, 127
        %v360 = vpop.permute.xlu0 %359
        %361 = vrot.lane.b32.xlu0 %v348, 127
        %v362 = vpop.permute.xlu0 %361
        %363 = vrot.lane.b32.xlu0 %v349, 127
        %v364 = vpop.permute.xlu0 %363
        %365 = vrot.lane.b32.xlu0 %v350, 127
        %v366 = vpop.permute.xlu0 %365
        %v367 = vadd.f32 %v343, %v352
        %v368 = vadd.f32 %v344, %v354
        %v369 = vadd.f32 %v345, %v356
        %v370 = vadd.f32 %v346, %v358
        %v371 = vadd.f32 %v347, %v360
        %v372 = vadd.f32 %v348, %v362
        %v373 = vadd.f32 %v349, %v364
        %v374 = vadd.f32 %v350, %v366
        %375 = vrot.lane.b32.xlu0 %v367, 126
        %v376 = vpop.permute.xlu0 %375
        %377 = vrot.lane.b32.xlu0 %v368, 126
        %v378 = vpop.permute.xlu0 %377
        %379 = vrot.lane.b32.xlu0 %v369, 126
        %v380 = vpop.permute.xlu0 %379
        %381 = vrot.lane.b32.xlu0 %v370, 126
        %v382 = vpop.permute.xlu0 %381
        %383 = vrot.lane.b32.xlu0 %v371, 126
        %v384 = vpop.permute.xlu0 %383
        %385 = vrot.lane.b32.xlu0 %v372, 126
        %v386 = vpop.permute.xlu0 %385
        %387 = vrot.lane.b32.xlu0 %v373, 126
        %v388 = vpop.permute.xlu0 %387
        %389 = vrot.lane.b32.xlu0 %v374, 126
        %v390 = vpop.permute.xlu0 %389
        %v391 = vadd.f32 %v367, %v376
        %v392 = vadd.f32 %v368, %v378
        %v393 = vadd.f32 %v369, %v380
        %v394 = vadd.f32 %v370, %v382
        %v395 = vadd.f32 %v371, %v384
        %v396 = vadd.f32 %v372, %v386
        %v397 = vadd.f32 %v373, %v388
        %v398 = vadd.f32 %v374, %v390
        %v399 = vlaneseq
        %v400 = vshrl.u32 %v399, 7
        %v401 = vsub.s32 1, %v400
        %v402 = vrot.slane %v266, %v401
        %v403 = vmul.f32 %v258, %v402
        %v404 = vmul.f32 %v259, %v402
        %v405 = vmul.f32 %v260, %v402
        %v406 = vmul.f32 %v261, %v402
        %v407 = vmul.f32 %v262, %v402
        %v408 = vmul.f32 %v263, %v402
        %v409 = vmul.f32 %v264, %v402
        %v410 = vmul.f32 %v265, %v402
        %v411 = vlaneseq
        %v412 = vshrl.u32 %v411, 7
        %v413 = vsub.s32 1, %v412
        %v414 = vrot.slane %v267, %v413
        %v415 = vadd.f32 %v403, %v414
        %v416 = vadd.f32 %v404, %v414
        %v417 = vadd.f32 %v405, %v414
        %v418 = vadd.f32 %v406, %v414
        %v419 = vadd.f32 %v407, %v414
        %v420 = vadd.f32 %v408, %v414
        %v421 = vadd.f32 %v409, %v414
        %v422 = vadd.f32 %v410, %v414
        %v423 = vmul.f32 %v415, %v415
        %v424 = vmul.f32 %v416, %v416
        %v425 = vmul.f32 %v417, %v417
        %v426 = vmul.f32 %v418, %v418
        %v427 = vmul.f32 %v419, %v419
        %v428 = vmul.f32 %v420, %v420
        %v429 = vmul.f32 %v421, %v421
        %v430 = vmul.f32 %v422, %v422
        %v431 = vadd.f32 %v423, 1.0
        %v432 = vadd.f32 %v424, 1.0
        %v433 = vadd.f32 %v425, 1.0
        %v434 = vadd.f32 %v426, 1.0
        %v435 = vadd.f32 %v427, 1.0
        %v436 = vadd.f32 %v428, 1.0
        %v437 = vadd.f32 %v429, 1.0
        %v438 = vadd.f32 %v430, 1.0
        %v439 = vrcp.pop %v431
        %v440 = vmul.f32 1.0, %v439
        %v441 = vrcp.pop %v432
        %v442 = vmul.f32 1.0, %v441
        %v443 = vrcp.pop %v433
        %v444 = vmul.f32 1.0, %v443
        %v445 = vrcp.pop %v434
        %v446 = vmul.f32 1.0, %v445
        %v447 = vrcp.pop %v435
        %v448 = vmul.f32 1.0, %v447
        %v449 = vrcp.pop %v436
        %v450 = vmul.f32 1.0, %v449
        %v451 = vrcp.pop %v437
        %v452 = vmul.f32 1.0, %v451
        %v453 = vrcp.pop %v438
        %v454 = vmul.f32 1.0, %v453
        %v455 = vlaneseq
        %v456 = vshrl.u32 %v455, 7
        %v457 = vsub.s32 1, %v456
        %v458 = vrot.slane %v268, %v457
        %v459 = vmul.f32 %v440, %v458
        %v460 = vmul.f32 %v442, %v458
        %v461 = vmul.f32 %v444, %v458
        %v462 = vmul.f32 %v446, %v458
        %v463 = vmul.f32 %v448, %v458
        %v464 = vmul.f32 %v450, %v458
        %v465 = vmul.f32 %v452, %v458
        %v466 = vmul.f32 %v454, %v458
        %467 = vrot.lane.b32.xlu0 %v459, 127
        %v468 = vpop.permute.xlu0 %467
        %469 = vrot.lane.b32.xlu0 %v460, 127
        %v470 = vpop.permute.xlu0 %469
        %471 = vrot.lane.b32.xlu0 %v461, 127
        %v472 = vpop.permute.xlu0 %471
        %473 = vrot.lane.b32.xlu0 %v462, 127
        %v474 = vpop.permute.xlu0 %473
        %475 = vrot.lane.b32.xlu0 %v463, 127
        %v476 = vpop.permute.xlu0 %475
        %477 = vrot.lane.b32.xlu0 %v464, 127
        %v478 = vpop.permute.xlu0 %477
        %479 = vrot.lane.b32.xlu0 %v465, 127
        %v480 = vpop.permute.xlu0 %479
        %481 = vrot.lane.b32.xlu0 %v466, 127
        %v482 = vpop.permute.xlu0 %481
        %v483 = vadd.f32 %v459, %v468
        %v484 = vadd.f32 %v460, %v470
        %v485 = vadd.f32 %v461, %v472
        %v486 = vadd.f32 %v462, %v474
        %v487 = vadd.f32 %v463, %v476
        %v488 = vadd.f32 %v464, %v478
        %v489 = vadd.f32 %v465, %v480
        %v490 = vadd.f32 %v466, %v482
        %491 = vrot.lane.b32.xlu0 %v483, 126
        %v492 = vpop.permute.xlu0 %491
        %493 = vrot.lane.b32.xlu0 %v484, 126
        %v494 = vpop.permute.xlu0 %493
        %495 = vrot.lane.b32.xlu0 %v485, 126
        %v496 = vpop.permute.xlu0 %495
        %497 = vrot.lane.b32.xlu0 %v486, 126
        %v498 = vpop.permute.xlu0 %497
        %499 = vrot.lane.b32.xlu0 %v487, 126
        %v500 = vpop.permute.xlu0 %499
        %501 = vrot.lane.b32.xlu0 %v488, 126
        %v502 = vpop.permute.xlu0 %501
        %503 = vrot.lane.b32.xlu0 %v489, 126
        %v504 = vpop.permute.xlu0 %503
        %505 = vrot.lane.b32.xlu0 %v490, 126
        %v506 = vpop.permute.xlu0 %505
        %v507 = vadd.f32 %v483, %v492
        %v508 = vadd.f32 %v484, %v494
        %v509 = vadd.f32 %v485, %v496
        %v510 = vadd.f32 %v486, %v498
        %v511 = vadd.f32 %v487, %v500
        %v512 = vadd.f32 %v488, %v502
        %v513 = vadd.f32 %v489, %v504
        %v514 = vadd.f32 %v490, %v506
        %515 = vrot.lane.b32.xlu0 %v507, 1
        %v516 = vpop.permute.xlu0 %515
        %517 = vrot.lane.b32.xlu0 %v508, 1
        %v518 = vpop.permute.xlu0 %517
        %519 = vrot.lane.b32.xlu0 %v509, 1
        %v520 = vpop.permute.xlu0 %519
        %521 = vrot.lane.b32.xlu0 %v510, 1
        %v522 = vpop.permute.xlu0 %521
        %523 = vrot.lane.b32.xlu0 %v511, 1
        %v524 = vpop.permute.xlu0 %523
        %525 = vrot.lane.b32.xlu0 %v512, 1
        %v526 = vpop.permute.xlu0 %525
        %527 = vrot.lane.b32.xlu0 %v513, 1
        %v528 = vpop.permute.xlu0 %527
        %529 = vrot.lane.b32.xlu0 %v514, 1
        %v530 = vpop.permute.xlu0 %529
        %vm531 = vcmp.eq.s32.totalorder %v282, 1
        %v532 = vsel %vm531, 1, 0
        %vm533 = vcmp.eq.s32.totalorder %v532, 1
        %v534 = vsel %vm533, %v516, %v391
        %v535 = vsel %vm533, %v518, %v392
        %v536 = vsel %vm533, %v520, %v393
        %v537 = vsel %vm533, %v522, %v394
        %v538 = vsel %vm533, %v524, %v395
        %v539 = vsel %vm533, %v526, %v396
        %v540 = vsel %vm533, %v528, %v397
        %v541 = vsel %vm533, %v530, %v398
        %v542 = vlaneseq
        %v543 = vshrl.u32 %v542, 7
        %v544 = vsub.s32 2, %v543
        %v545 = vrot.slane %v266, %v544
        %v546 = vmul.f32 %v258, %v545
        %v547 = vmul.f32 %v259, %v545
        %v548 = vmul.f32 %v260, %v545
        %v549 = vmul.f32 %v261, %v545
        %v550 = vmul.f32 %v262, %v545
        %v551 = vmul.f32 %v263, %v545
        %v552 = vmul.f32 %v264, %v545
        %v553 = vmul.f32 %v265, %v545
        %v554 = vlaneseq
        %v555 = vshrl.u32 %v554, 7
        %v556 = vsub.s32 2, %v555
        %v557 = vrot.slane %v267, %v556
        %v558 = vadd.f32 %v546, %v557
        %v559 = vadd.f32 %v547, %v557
        %v560 = vadd.f32 %v548, %v557
        %v561 = vadd.f32 %v549, %v557
        %v562 = vadd.f32 %v550, %v557
        %v563 = vadd.f32 %v551, %v557
        %v564 = vadd.f32 %v552, %v557
        %v565 = vadd.f32 %v553, %v557
        %v566 = vmul.f32 %v558, %v558
        %v567 = vmul.f32 %v559, %v559
        %v568 = vmul.f32 %v560, %v560
        %v569 = vmul.f32 %v561, %v561
        %v570 = vmul.f32 %v562, %v562
        %v571 = vmul.f32 %v563, %v563
        %v572 = vmul.f32 %v564, %v564
        %v573 = vmul.f32 %v565, %v565
        %v574 = vadd.f32 %v566, 1.0
        %v575 = vadd.f32 %v567, 1.0
        %v576 = vadd.f32 %v568, 1.0
        %v577 = vadd.f32 %v569, 1.0
        %v578 = vadd.f32 %v570, 1.0
        %v579 = vadd.f32 %v571, 1.0
        %v580 = vadd.f32 %v572, 1.0
        %v581 = vadd.f32 %v573, 1.0
        %v582 = vrcp.pop %v574
        %v583 = vmul.f32 1.0, %v582
        %v584 = vrcp.pop %v575
        %v585 = vmul.f32 1.0, %v584
        %v586 = vrcp.pop %v576
        %v587 = vmul.f32 1.0, %v586
        %v588 = vrcp.pop %v577
        %v589 = vmul.f32 1.0, %v588
        %v590 = vrcp.pop %v578
        %v591 = vmul.f32 1.0, %v590
        %v592 = vrcp.pop %v579
        %v593 = vmul.f32 1.0, %v592
        %v594 = vrcp.pop %v580
        %v595 = vmul.f32 1.0, %v594
        %v596 = vrcp.pop %v581
        %v597 = vmul.f32 1.0, %v596
        %v598 = vlaneseq
        %v599 = vshrl.u32 %v598, 7
        %v600 = vsub.s32 2, %v599
        %v601 = vrot.slane %v268, %v600
        %v602 = vmul.f32 %v583, %v601
        %v603 = vmul.f32 %v585, %v601
        %v604 = vmul.f32 %v587, %v601
        %v605 = vmul.f32 %v589, %v601
        %v606 = vmul.f32 %v591, %v601
        %v607 = vmul.f32 %v593, %v601
        %v608 = vmul.f32 %v595, %v601
        %v609 = vmul.f32 %v597, %v601
        %610 = vrot.lane.b32.xlu0 %v602, 127
        %v611 = vpop.permute.xlu0 %610
        %612 = vrot.lane.b32.xlu0 %v603, 127
        %v613 = vpop.permute.xlu0 %612
        %614 = vrot.lane.b32.xlu0 %v604, 127
        %v615 = vpop.permute.xlu0 %614
        %616 = vrot.lane.b32.xlu0 %v605, 127
        %v617 = vpop.permute.xlu0 %616
        %618 = vrot.lane.b32.xlu0 %v606, 127
        %v619 = vpop.permute.xlu0 %618
        %620 = vrot.lane.b32.xlu0 %v607, 127
        %v621 = vpop.permute.xlu0 %620
        %622 = vrot.lane.b32.xlu0 %v608, 127
        %v623 = vpop.permute.xlu0 %622
        %624 = vrot.lane.b32.xlu0 %v609, 127
        %v625 = vpop.permute.xlu0 %624
        %v626 = vadd.f32 %v602, %v611
        %v627 = vadd.f32 %v603, %v613
        %v628 = vadd.f32 %v604, %v615
        %v629 = vadd.f32 %v605, %v617
        %v630 = vadd.f32 %v606, %v619
        %v631 = vadd.f32 %v607, %v621
        %v632 = vadd.f32 %v608, %v623
        %v633 = vadd.f32 %v609, %v625
        %634 = vrot.lane.b32.xlu0 %v626, 126
        %v635 = vpop.permute.xlu0 %634
        %636 = vrot.lane.b32.xlu0 %v627, 126
        %v637 = vpop.permute.xlu0 %636
        %638 = vrot.lane.b32.xlu0 %v628, 126
        %v639 = vpop.permute.xlu0 %638
        %640 = vrot.lane.b32.xlu0 %v629, 126
        %v641 = vpop.permute.xlu0 %640
        %642 = vrot.lane.b32.xlu0 %v630, 126
        %v643 = vpop.permute.xlu0 %642
        %644 = vrot.lane.b32.xlu0 %v631, 126
        %v645 = vpop.permute.xlu0 %644
        %646 = vrot.lane.b32.xlu0 %v632, 126
        %v647 = vpop.permute.xlu0 %646
        %648 = vrot.lane.b32.xlu0 %v633, 126
        %v649 = vpop.permute.xlu0 %648
        %v650 = vadd.f32 %v626, %v635
        %v651 = vadd.f32 %v627, %v637
        %v652 = vadd.f32 %v628, %v639
        %v653 = vadd.f32 %v629, %v641
        %v654 = vadd.f32 %v630, %v643
        %v655 = vadd.f32 %v631, %v645
        %v656 = vadd.f32 %v632, %v647
        %v657 = vadd.f32 %v633, %v649
        %658 = vrot.lane.b32.xlu0 %v650, 2
        %v659 = vpop.permute.xlu0 %658
        %660 = vrot.lane.b32.xlu0 %v651, 2
        %v661 = vpop.permute.xlu0 %660
        %662 = vrot.lane.b32.xlu0 %v652, 2
        %v663 = vpop.permute.xlu0 %662
        %664 = vrot.lane.b32.xlu0 %v653, 2
        %v665 = vpop.permute.xlu0 %664
        %666 = vrot.lane.b32.xlu0 %v654, 2
        %v667 = vpop.permute.xlu0 %666
        %668 = vrot.lane.b32.xlu0 %v655, 2
        %v669 = vpop.permute.xlu0 %668
        %670 = vrot.lane.b32.xlu0 %v656, 2
        %v671 = vpop.permute.xlu0 %670
        %672 = vrot.lane.b32.xlu0 %v657, 2
        %v673 = vpop.permute.xlu0 %672
        %vm674 = vcmp.eq.s32.totalorder %v282, 2
        %v675 = vsel %vm674, 1, 0
        %vm676 = vcmp.eq.s32.totalorder %v675, 1
        %v677 = vsel %vm676, %v659, %v534
        %v678 = vsel %vm676, %v661, %v535
        %v679 = vsel %vm676, %v663, %v536
        %v680 = vsel %vm676, %v665, %v537
        %v681 = vsel %vm676, %v667, %v538
        %v682 = vsel %vm676, %v669, %v539
        %v683 = vsel %vm676, %v671, %v540
        %v684 = vsel %vm676, %v673, %v541
        %v685 = vlaneseq
        %v686 = vshrl.u32 %v685, 7
        %v687 = vsub.s32 3, %v686
        %v688 = vrot.slane %v266, %v687
        %v689 = vmul.f32 %v258, %v688
        %v690 = vmul.f32 %v259, %v688
        %v691 = vmul.f32 %v260, %v688
        %v692 = vmul.f32 %v261, %v688
        %v693 = vmul.f32 %v262, %v688
        %v694 = vmul.f32 %v263, %v688
        %v695 = vmul.f32 %v264, %v688
        %v696 = vmul.f32 %v265, %v688
        %v697 = vlaneseq
        %v698 = vshrl.u32 %v697, 7
        %v699 = vsub.s32 3, %v698
        %v700 = vrot.slane %v267, %v699
        %v701 = vadd.f32 %v689, %v700
        %v702 = vadd.f32 %v690, %v700
        %v703 = vadd.f32 %v691, %v700
        %v704 = vadd.f32 %v692, %v700
        %v705 = vadd.f32 %v693, %v700
        %v706 = vadd.f32 %v694, %v700
        %v707 = vadd.f32 %v695, %v700
        %v708 = vadd.f32 %v696, %v700
        %v709 = vmul.f32 %v701, %v701
        %v710 = vmul.f32 %v702, %v702
        %v711 = vmul.f32 %v703, %v703
        %v712 = vmul.f32 %v704, %v704
        %v713 = vmul.f32 %v705, %v705
        %v714 = vmul.f32 %v706, %v706
        %v715 = vmul.f32 %v707, %v707
        %v716 = vmul.f32 %v708, %v708
        %v717 = vadd.f32 %v709, 1.0
        %v718 = vadd.f32 %v710, 1.0
        %v719 = vadd.f32 %v711, 1.0
        %v720 = vadd.f32 %v712, 1.0
        %v721 = vadd.f32 %v713, 1.0
        %v722 = vadd.f32 %v714, 1.0
        %v723 = vadd.f32 %v715, 1.0
        %v724 = vadd.f32 %v716, 1.0
        %v725 = vrcp.pop %v717
        %v726 = vmul.f32 1.0, %v725
        %v727 = vrcp.pop %v718
        %v728 = vmul.f32 1.0, %v727
        %v729 = vrcp.pop %v719
        %v730 = vmul.f32 1.0, %v729
        %v731 = vrcp.pop %v720
        %v732 = vmul.f32 1.0, %v731
        %v733 = vrcp.pop %v721
        %v734 = vmul.f32 1.0, %v733
        %v735 = vrcp.pop %v722
        %v736 = vmul.f32 1.0, %v735
        %v737 = vrcp.pop %v723
        %v738 = vmul.f32 1.0, %v737
        %v739 = vrcp.pop %v724
        %v740 = vmul.f32 1.0, %v739
        %v741 = vlaneseq
        %v742 = vshrl.u32 %v741, 7
        %v743 = vsub.s32 3, %v742
        %v744 = vrot.slane %v268, %v743
        %v745 = vmul.f32 %v726, %v744
        %v746 = vmul.f32 %v728, %v744
        %v747 = vmul.f32 %v730, %v744
        %v748 = vmul.f32 %v732, %v744
        %v749 = vmul.f32 %v734, %v744
        %v750 = vmul.f32 %v736, %v744
        %v751 = vmul.f32 %v738, %v744
        %v752 = vmul.f32 %v740, %v744
        %753 = vrot.lane.b32.xlu0 %v745, 127
        %v754 = vpop.permute.xlu0 %753
        %755 = vrot.lane.b32.xlu0 %v746, 127
        %v756 = vpop.permute.xlu0 %755
        %757 = vrot.lane.b32.xlu0 %v747, 127
        %v758 = vpop.permute.xlu0 %757
        %759 = vrot.lane.b32.xlu0 %v748, 127
        %v760 = vpop.permute.xlu0 %759
        %761 = vrot.lane.b32.xlu0 %v749, 127
        %v762 = vpop.permute.xlu0 %761
        %763 = vrot.lane.b32.xlu0 %v750, 127
        %v764 = vpop.permute.xlu0 %763
        %765 = vrot.lane.b32.xlu0 %v751, 127
        %v766 = vpop.permute.xlu0 %765
        %767 = vrot.lane.b32.xlu0 %v752, 127
        %v768 = vpop.permute.xlu0 %767
        %v769 = vadd.f32 %v745, %v754
        %v770 = vadd.f32 %v746, %v756
        %v771 = vadd.f32 %v747, %v758
        %v772 = vadd.f32 %v748, %v760
        %v773 = vadd.f32 %v749, %v762
        %v774 = vadd.f32 %v750, %v764
        %v775 = vadd.f32 %v751, %v766
        %v776 = vadd.f32 %v752, %v768
        %777 = vrot.lane.b32.xlu0 %v769, 126
        %v778 = vpop.permute.xlu0 %777
        %779 = vrot.lane.b32.xlu0 %v770, 126
        %v780 = vpop.permute.xlu0 %779
        %781 = vrot.lane.b32.xlu0 %v771, 126
        %v782 = vpop.permute.xlu0 %781
        %783 = vrot.lane.b32.xlu0 %v772, 126
        %v784 = vpop.permute.xlu0 %783
        %785 = vrot.lane.b32.xlu0 %v773, 126
        %v786 = vpop.permute.xlu0 %785
        %787 = vrot.lane.b32.xlu0 %v774, 126
        %v788 = vpop.permute.xlu0 %787
        %789 = vrot.lane.b32.xlu0 %v775, 126
        %v790 = vpop.permute.xlu0 %789
        %791 = vrot.lane.b32.xlu0 %v776, 126
        %v792 = vpop.permute.xlu0 %791
        %v793 = vadd.f32 %v769, %v778
        %v794 = vadd.f32 %v770, %v780
        %v795 = vadd.f32 %v771, %v782
        %v796 = vadd.f32 %v772, %v784
        %v797 = vadd.f32 %v773, %v786
        %v798 = vadd.f32 %v774, %v788
        %v799 = vadd.f32 %v775, %v790
        %v800 = vadd.f32 %v776, %v792
        %801 = vrot.lane.b32.xlu0 %v793, 3
        %v802 = vpop.permute.xlu0 %801
        %803 = vrot.lane.b32.xlu0 %v794, 3
        %v804 = vpop.permute.xlu0 %803
        %805 = vrot.lane.b32.xlu0 %v795, 3
        %v806 = vpop.permute.xlu0 %805
        %807 = vrot.lane.b32.xlu0 %v796, 3
        %v808 = vpop.permute.xlu0 %807
        %809 = vrot.lane.b32.xlu0 %v797, 3
        %v810 = vpop.permute.xlu0 %809
        %811 = vrot.lane.b32.xlu0 %v798, 3
        %v812 = vpop.permute.xlu0 %811
        %813 = vrot.lane.b32.xlu0 %v799, 3
        %v814 = vpop.permute.xlu0 %813
        %815 = vrot.lane.b32.xlu0 %v800, 3
        %v816 = vpop.permute.xlu0 %815
        %vm817 = vcmp.eq.s32.totalorder %v282, 3
        %v818 = vsel %vm817, 1, 0
        %vm819 = vcmp.eq.s32.totalorder %v818, 1
        %v820 = vsel %vm819, %v802, %v677
        %v821 = vsel %vm819, %v804, %v678
        %v822 = vsel %vm819, %v806, %v679
        %v823 = vsel %vm819, %v808, %v680
        %v824 = vsel %vm819, %v810, %v681
        %v825 = vsel %vm819, %v812, %v682
        %v826 = vsel %vm819, %v814, %v683
        %v827 = vsel %vm819, %v816, %v684
        %v828 = vld [vmem:[%s4] sm:$0x1]
        %v830 = vlaneseq
        %v831 = vshrl.u32 %v830, 7
        %v832 = vsub.s32 0, %v831
        %v833 = vrot.slane %v828, %v832
        %v835 = vadd.f32 %v820, %v833
        %v836 = vadd.f32 %v821, %v833
        %v837 = vadd.f32 %v822, %v833
        %v838 = vadd.f32 %v823, %v833
        %v839 = vadd.f32 %v824, %v833
        %v840 = vadd.f32 %v825, %v833
        %v841 = vadd.f32 %v826, %v833
        %v842 = vadd.f32 %v827, %v833
        %843 = vst [vmem:[%s255] sm:$0xff] %v835
        %844 = vst [vmem:[%s255 + $0x8] sm:$0xff] %v836
        %845 = vst [vmem:[%s255 + $0x10] sm:$0xff] %v837
        %846 = vst [vmem:[%s255 + $0x18] sm:$0xff] %v838
        %847 = vst [vmem:[%s255 + $0x20] sm:$0xff] %v839
        %848 = vst [vmem:[%s255 + $0x28] sm:$0xff] %v840
        %849 = vst [vmem:[%s255 + $0x30] sm:$0xff] %v841
        %850 = vst [vmem:[%s255 + $0x38] sm:$0xff] %v842
        %s851 = sand.u32 %s141, 1
        %s852 = scalar_lea.sflag [#allocation4], %s851
        %s853 = sand.u32 %s141, 1
        %s854 = smul.addr %s853, 64
        %s855 = scalar_lea.vmem [#allocation7], %s854
        // Predicated region
        $region49: #{tpu_custom_call.1} parent=39 // pred_check
          %p856 = pneg %p151
        $region50: #{tpu_custom_call.1} parent=39 // pred_check_branch
          %858 = sbr.rel (%p856) target = $region52
        $region51: #{tpu_custom_call.1} parent=39 // pred_region
          %s859 = smul.u32 8, %s23
          %s861 = ssub.s32 1024, 1024
          %862 = vsyncadd %s852, %s861
          %s863 = smul.addr %s859, 128
          %s864 = scalar_lea.hbm %s5, %s863
          %s865 = sshll.u32 %s855, 4
          %s866 = int_to_ptr.vmem [resolvable:$true] %s865
          %871 = dma.vmem_to_hbm [thread:$0]  %s866, 1024, %s864, %s852, 128, 128, 8
        $region52: #{tpu_custom_call.1} parent=39 // pred_fallthru
          _
      $region40: #{tpu_custom_call.1} parent=5 // pred_fallthru
        _
      %p872 = scmp.le.s32.totalorder 2, %s18
      // Predicated region
      $region53: #{tpu_custom_call.1} parent=5 // pred_check
        %p873 = pneg %p872
      $region54: #{tpu_custom_call.1} parent=5 // pred_check_branch
        %875 = sbr.rel (%p873) target = $region56
      $region55: #{tpu_custom_call.1} parent=5 // pred_region
        %s876 = ssub.s32 %s18, 2
        // Predicated region
        $region57: #{tpu_custom_call.1} parent=55 // pred_check
          %p877 = pneg %p157
        $region58: #{tpu_custom_call.1} parent=55 // pred_check_branch
          %879 = sbr.rel (%p877) target = $region60
        $region59: #{tpu_custom_call.1} parent=55 // pred_region
          %s880 = sand.u32 %s142, 1
          %s881 = scalar_lea.sflag [#allocation4], %s880
          %s882 = sand.u32 %s142, 1
          %s883 = smul.addr %s882, 64
          %s884 = scalar_lea.vmem [#allocation7], %s883
          %885 = dma.done %s881, 1024
        $region60: #{tpu_custom_call.1} parent=55 // pred_fallthru
          _
      $region56: #{tpu_custom_call.1} parent=5 // pred_fallthru
        _
    $region6: #{tpu_custom_call.1} parent=1 // loop_footer
      %s22 = sadd.s32 1, %s18
    $region7: #{tpu_custom_call.1} parent=1 // loop_footer_branch
      %17 = sbr.rel target = $region3
    $region8: #{tpu_custom_call.1} parent=1 // loop_exit
      _
    %886 = vsyncpa [#allocation3], 1
    %s887 = scalar_lea.sflag [#allocation3], 1
    %888 = vsyncpa %s887, 1
    %889 = vsyncpa [#allocation6], 1
    %890 = vsyncpa [#allocation4], 1
    %s891 = scalar_lea.sflag [#allocation4], 1
    %892 = vsyncpa %s891, 1

</llo_original>
